<compile_context>
chip_gen: v7x
topology: tpu7x:2x2x1
jax: 0.10.0
libtpu: 0.0.40
codegen_flags: <defaults>
</compile_context>

<pallas_src>
import jax
import jax.numpy as jnp
from jax.experimental import pallas as pl
from jax.experimental.pallas import tpu as pltpu


def _make_kernel(num_classes: int, epsilon: float, batch_size: int,
                 block_rows: int):
    eps_over_k = epsilon / num_classes
    one_minus_eps = 1.0 - epsilon
    c_f = float(num_classes)

    def kernel(x_ref, tw_ref, o_ref):
        i = pl.program_id(0)

        x = x_ref[...]                               # (TB, C) logits, native dtype
        tw = tw_ref[...]                             # (TB, 2) f32: [label, weight]
        t = tw[:, 0:1].astype(jnp.int32)             # (TB, 1) class index (exact <2^24)
        w = tw[:, 1:2]                               # (TB, 1) sample weight

        # Row max in the native dtype (exact; packed bf16 vregs on v6e/v7x),
        # then upcast once for the f32 math.
        m = jnp.max(x, axis=1, keepdims=True).astype(jnp.float32)   # (TB, 1)
        xf = x.astype(jnp.float32)                                  # (TB, C)

        # Stable log-sum-exp pieces; logZ = m + lse.  z = xf - m is consumed by
        # exp() directly and never materialized as a reused temp.
        sum_exp = jnp.sum(jnp.exp(xf - m), axis=1, keepdims=True)   # (TB, 1)
        lse = jnp.log(sum_exp)                                      # (TB, 1)

        # Target logit via masked reduce on raw xf (no smoothed-label tensor,
        # no z temp): logp[target] = x[target] - m - lse.
        col = jax.lax.broadcasted_iota(jnp.int32, xf.shape, 1)
        x_tgt = jnp.sum(jnp.where(col == t, xf, 0.0), axis=1, keepdims=True)
        logp_tgt = x_tgt - m - lse                                  # (TB, 1)

        # sum_j logp_j = sum_j x_j - C * (m + lse)   (no (TB,C) log_probs tensor)
        sum_logp = jnp.sum(xf, axis=1, keepdims=True) - c_f * (m + lse)

        per_sample = -(one_minus_eps * logp_tgt + eps_over_k * sum_logp)

        # Mask rows of a partial final tile (handles B % TB != 0 and any OOB
        # garbage/NaN in the padded block region).
        row = jax.lax.broadcasted_iota(jnp.int32, per_sample.shape, 0)
        valid = (row + i * block_rows) < batch_size
        partial = jnp.sum(jnp.where(valid, per_sample * w, 0.0))

        # Per-tile partial into this tile's own (8,128)-aligned block: no shared
        # accumulator, so the batch axis can be sharded across TensorCores.
        o_ref[...] = jnp.broadcast_to(partial, o_ref.shape)

    return kernel


def _vmem_budget():
    """Returns (vmem_limit_bytes, logits_block_cap_bytes), generation-aware."""
    try:
        cap = int(pltpu.get_tpu_info().vmem_capacity_bytes)
    except Exception:
        cap = 64 << 20                      # conservative: assume v7x-sized VMEM
    if cap >= (100 << 20):                  # v5e / v6e: 128 MiB physical per core
        return 64 << 20, 8 << 20
    return 44 << 20, 4 << 20                # v7x: 64 MiB physical, leave headroom


def _pick_block_rows(batch: int, num_classes: int, itemsize: int,
                     vmem_budget_bytes: int, block_cap_bytes: int) -> int:
    """Rows per tile sized by bytes (no artificial row cap).

    Per-row estimate: 2 double-buffered native-dtype logits rows + ~4 f32
    full-width elementwise temps + the lane-padded (row,2)->(row,128) tw buffers.
    """
    per_row = 2 * num_classes * itemsize + 4 * num_classes * 4 + 1024
    rows = (vmem_budget_bytes * 3 // 4) // max(1, per_row)
    rows = min(rows, block_cap_bytes // max(1, num_classes * itemsize))
    # Sublane alignment: 8 rows for 4-byte, 16 for 2-byte, 32 for 1-byte dtypes.
    align = 8 * max(1, 4 // max(1, itemsize))
    rows = max(align, (rows // align) * align)
    if rows >= batch:
        return batch        # single full-extent block: no alignment constraint
    return rows


def cross_entropy_label_smooth_weighted(inputs, targets, weights,
                                        num_classes: int, epsilon: float = 0.1,
                                        block_rows=None):
    """inputs: (B, C) logits (any float dtype; bf16 recommended for bandwidth);
    targets: (B,) int labels; weights: (B,) float. Returns scalar f32 loss."""
    B, C = inputs.shape
    assert C == num_classes
    # NOTE: for C < ~128 only a fraction of each vreg's 128 lanes is used and
    # plain XLA is typically competitive; this kernel targets lane-dense C.

    vmem_limit, block_cap = _vmem_budget()
    if block_rows is None:
        block_rows = _pick_block_rows(B, C, inputs.dtype.itemsize,
                                      vmem_limit, block_cap)
    block_rows = min(block_rows, B)
    num_tiles = pl.cdiv(B, block_rows)

    # Pack labels + weights into a single side stream: one DMA descriptor and
    # one lane-padded VMEM buffer per step instead of two.  Class indices are
    # exact in f32 up to 2**24; cast back to int32 inside the kernel.
    tw = jnp.stack([targets.astype(jnp.float32),
                    weights.astype(jnp.float32)], axis=1)          # (B, 2) f32

    kernel = _make_kernel(num_classes, epsilon, B, block_rows)

    partials = pl.pallas_call(
        kernel,
        out_shape=jax.ShapeDtypeStruct((num_tiles, 8, 128), jnp.float32),
        grid_spec=pltpu.PrefetchScalarGridSpec(
            num_scalar_prefetch=0,
            grid=(num_tiles,),
            in_specs=[
                pl.BlockSpec((block_rows, C), lambda i: (i, 0)),
                pl.BlockSpec((block_rows, 2), lambda i: (i, 0)),
            ],
            out_specs=pl.BlockSpec((1, 8, 128), lambda i: (i, 0, 0)),
        ),
        compiler_params=pltpu.CompilerParams(
            dimension_semantics=("parallel",),   # batch tiles are independent
            vmem_limit_bytes=vmem_limit,
        ),
    )(inputs, tw)

    # Tiny (num_tiles,) reduction of per-tile partials in XLA.
    return jnp.sum(partials[:, 0, 0])
    # TODO(synk): for LLM-scale C (128k+ vocab) add a second, innermost grid
    # axis over C with an online (flash-style) log-sum-exp; not needed here.


def _reference(inputs, targets, weights, num_classes, epsilon=0.1):
    # Pure-JAX reference mirroring the PyTorch forward.
    log_probs = jax.nn.log_softmax(inputs.astype(jnp.float32), axis=1)
    onehot = jax.nn.one_hot(targets, num_classes, dtype=jnp.float32)
    smooth = (1.0 - epsilon) * onehot + epsilon / num_classes
    per = jnp.sum(-smooth * log_probs, axis=1)
    return jnp.sum(per * weights.astype(jnp.float32))


if __name__ == "__main__":
    epsilon = 0.1
    key = jax.random.PRNGKey(0)

    # --- small single-tile f32 case (module-scale shapes) ---
    num_classes, batch = 16, 8
    k1, k2, k3 = jax.random.split(key, 3)
    x = jax.random.normal(k1, (batch, num_classes), dtype=jnp.float32)
    t = jax.random.randint(k2, (batch,), 0, num_classes, dtype=jnp.int32)
    w = jax.random.uniform(k3, (batch,), dtype=jnp.float32)

    loss = cross_entropy_label_smooth_weighted(x, t, w, num_classes, epsilon)
    loss = jax.block_until_ready(loss)
    ref = _reference(x, t, w, num_classes, epsilon)
    assert jnp.allclose(loss, ref, rtol=1e-5, atol=1e-5), (loss, ref)

    # --- multi-tile f32 case with a partial last tile (parallel tiles + mask) ---
    num_classes2, batch2 = 128, 300
    k4, k5, k6 = jax.random.split(k3, 3)
    x2 = jax.random.normal(k4, (batch2, num_classes2), dtype=jnp.float32)
    t2 = jax.random.randint(k5, (batch2,), 0, num_classes2, dtype=jnp.int32)
    w2 = jax.random.uniform(k6, (batch2,), dtype=jnp.float32)

    loss2 = cross_entropy_label_smooth_weighted(
        x2, t2, w2, num_classes2, epsilon, block_rows=128)
    loss2 = jax.block_until_ready(loss2)
    ref2 = _reference(x2, t2, w2, num_classes2, epsilon)
    assert jnp.allclose(loss2, ref2, rtol=1e-4, atol=1e-4), (loss2, ref2)

    # --- bf16 logits streamed natively (halved HBM bytes), multi-tile ---
    x3 = x2.astype(jnp.bfloat16)
    loss3 = cross_entropy_label_smooth_weighted(
        x3, t2, w2, num_classes2, epsilon, block_rows=128)
    loss3 = jax.block_until_ready(loss3)
    ref3 = _reference(x3.astype(jnp.float32), t2, w2, num_classes2, epsilon)
    assert jnp.allclose(loss3, ref3, rtol=2e-3, atol=2e-3), (loss3, ref3)

    # --- auto block sizing on a larger batch (exercises byte-based tiling) ---
    loss4 = cross_entropy_label_smooth_weighted(
        x2, t2, w2, num_classes2, epsilon)          # block_rows=None -> auto
    loss4 = jax.block_until_ready(loss4)
    assert jnp.allclose(loss4, ref2, rtol=1e-4, atol=1e-4), (loss4, ref2)

    print("KERNEL_OK")
</pallas_src>

<mosaic_0001>
module attributes {stable_mosaic.version = 11 : i64} {
  func.func @kernel(%arg0: i32, %arg1: memref<8x16xf32, #tpu.memory_space<vmem>>, %arg2: memref<8x2xf32, #tpu.memory_space<vmem>>, %arg3: memref<1x8x128xf32, #tpu.memory_space<vmem>>) attributes {dimension_semantics = [#tpu.dimension_semantics<parallel>], iteration_bounds = array<i64: 1>, scalar_prefetch = 0 : i64, scratch_operands = 0 : i64, tpu.core_type = #tpu.core_type<tc>, window_params = [{transform_indices = @transform_0, window_bounds = array<i64: 8, 16>}, {transform_indices = @transform_1, window_bounds = array<i64: 8, 2>}, {transform_indices = @transform_2, window_bounds = array<i64: 1, 8, 128>}]} {
    %c0 = arith.constant 0 : index
    %c0_0 = arith.constant 0 : index
    %0 = vector.load %arg1[%c0, %c0_0] : memref<8x16xf32, #tpu.memory_space<vmem>>, vector<8x16xf32>
    %c0_1 = arith.constant 0 : index
    %c0_2 = arith.constant 0 : index
    %1 = vector.load %arg2[%c0_1, %c0_2] : memref<8x2xf32, #tpu.memory_space<vmem>>, vector<8x2xf32>
    %2 = vector.extract_strided_slice %1 {offsets = [0, 0], sizes = [8, 1], strides = [1, 1]} : vector<8x2xf32> to vector<8x1xf32>
    %3 = arith.fptosi %2 : vector<8x1xf32> to vector<8x1xi32>
    %4 = vector.extract_strided_slice %1 {offsets = [0, 1], sizes = [8, 1], strides = [1, 1]} : vector<8x2xf32> to vector<8x1xf32>
    %cst = arith.constant dense<0xFF800000> : vector<8xf32>
    %5 = vector.multi_reduction <maximumf>, %0, %cst [1] : vector<8x16xf32> to vector<8xf32>
    %6 = vector.shape_cast %5 : vector<8xf32> to vector<8x1xf32>
    %7 = vector.broadcast %6 : vector<8x1xf32> to vector<8x16xf32>
    %8 = arith.subf %0, %7 : vector<8x16xf32>
    %9 = math.exp %8 : vector<8x16xf32>
    %cst_3 = arith.constant dense<0.000000e+00> : vector<8xf32>
    %10 = vector.multi_reduction <add>, %9, %cst_3 [1] : vector<8x16xf32> to vector<8xf32>
    %11 = vector.shape_cast %10 : vector<8xf32> to vector<8x1xf32>
    %12 = math.log %11 : vector<8x1xf32>
    %13 = tpu.iota {dimensions = array<i32: 1>} : vector<8x16xi32>
    %14 = vector.broadcast %3 : vector<8x1xi32> to vector<8x16xi32>
    %15 = arith.cmpi eq, %13, %14 : vector<8x16xi32>
    %cst_4 = arith.constant 0.000000e+00 : f32
    %16 = vector.broadcast %cst_4 : f32 to vector<8x16xf32>
    %17 = arith.select %15, %0, %16 : vector<8x16xi1>, vector<8x16xf32>
    %cst_5 = arith.constant dense<0.000000e+00> : vector<8xf32>
    %18 = vector.multi_reduction <add>, %17, %cst_5 [1] : vector<8x16xf32> to vector<8xf32>
    %19 = vector.shape_cast %18 : vector<8xf32> to vector<8x1xf32>
    %20 = arith.subf %19, %6 : vector<8x1xf32>
    %21 = arith.subf %20, %12 : vector<8x1xf32>
    %cst_6 = arith.constant dense<0.000000e+00> : vector<8xf32>
    %22 = vector.multi_reduction <add>, %0, %cst_6 [1] : vector<8x16xf32> to vector<8xf32>
    %23 = vector.shape_cast %22 : vector<8xf32> to vector<8x1xf32>
    %24 = arith.addf %6, %12 : vector<8x1xf32>
    %cst_7 = arith.constant 1.600000e+01 : f32
    %25 = vector.broadcast %cst_7 : f32 to vector<8x1xf32>
    %26 = arith.mulf %25, %24 : vector<8x1xf32>
    %27 = arith.subf %23, %26 : vector<8x1xf32>
    %cst_8 = arith.constant 0.899999976 : f32
    %28 = vector.broadcast %cst_8 : f32 to vector<8x1xf32>
    %29 = arith.mulf %28, %21 : vector<8x1xf32>
    %cst_9 = arith.constant 6.250000e-03 : f32
    %30 = vector.broadcast %cst_9 : f32 to vector<8x1xf32>
    %31 = arith.mulf %30, %27 : vector<8x1xf32>
    %32 = arith.addf %29, %31 : vector<8x1xf32>
    %cst_10 = arith.constant 0.000000e+00 : f32
    %33 = vector.broadcast %cst_10 : f32 to vector<8x1xf32>
    %34 = arith.subf %33, %32 : vector<8x1xf32>
    %35 = tpu.iota {dimensions = array<i32: 0>} : vector<8x1xi32>
    %c8_i32 = arith.constant 8 : i32
    %36 = arith.muli %arg0, %c8_i32 : i32
    %37 = vector.broadcast %36 : i32 to vector<8x1xi32>
    %38 = arith.addi %35, %37 : vector<8x1xi32>
    %c8_i32_11 = arith.constant 8 : i32
    %39 = vector.broadcast %c8_i32_11 : i32 to vector<8x1xi32>
    %40 = arith.cmpi slt, %38, %39 : vector<8x1xi32>
    %41 = arith.mulf %34, %4 : vector<8x1xf32>
    %cst_12 = arith.constant 0.000000e+00 : f32
    %42 = vector.broadcast %cst_12 : f32 to vector<8x1xf32>
    %43 = arith.select %40, %41, %42 : vector<8x1xi1>, vector<8x1xf32>
    %44 = vector.shape_cast %43 : vector<8x1xf32> to vector<1x8x1xf32>
    %cst_13 = arith.constant dense<0.000000e+00> : vector<1xf32>
    %45 = vector.multi_reduction <add>, %44, %cst_13 [1, 2] : vector<1x8x1xf32> to vector<1xf32>
    %46 = vector.shape_cast %45 : vector<1xf32> to vector<1x1x1xf32>
    %47 = vector.extract %46[0, 0, 0] : f32 from vector<1x1x1xf32>
    %48 = vector.broadcast %47 : f32 to vector<1x8x128xf32>
    %c0_14 = arith.constant 0 : index
    %c0_15 = arith.constant 0 : index
    %c0_16 = arith.constant 0 : index
    %49 = vector.load %arg3[%c0_14, %c0_15, %c0_16] : memref<1x8x128xf32, #tpu.memory_space<vmem>>, vector<1x8x128xf32>
    tpu.vector_store %arg3[%c0_14, %c0_15, %c0_16], %48 {strides = array<i32>} : memref<1x8x128xf32, #tpu.memory_space<vmem>>, vector<1x8x128xf32>,
    return
  }
  func.func @transform_0(%arg0: i32) -> (i32, i32) {
    %c0_i32 = arith.constant 0 : i32
    %c0_i32_0 = arith.constant 0 : i32
    return %arg0, %c0_i32 : i32, i32
  }
  func.func @transform_1(%arg0: i32) -> (i32, i32) {
    %c0_i32 = arith.constant 0 : i32
    %c0_i32_0 = arith.constant 0 : i32
    return %arg0, %c0_i32 : i32, i32
  }
  func.func @transform_2(%arg0: i32) -> (i32, i32, i32) {
    %c0_i32 = arith.constant 0 : i32
    %c0_i32_0 = arith.constant 0 : i32
    %c0_i32_1 = arith.constant 0 : i32
    return %arg0, %c0_i32, %c0_i32_0 : i32, i32, i32
  }
}

</mosaic_0001>

<llo_original>
// kernel: tpu_custom_call.1
$region0: #{tpu_custom_call.1}
  #allocation0 [shape = 'u32[]', space=smem, size = 0x4, offset = 0x4, fixed_abs, tag = 'smem constant byte address 0x4 - core index']
  #allocation1 [shape = 'u32[144,128]{1,0:T(1,128)}', space=vmem, size = 0x12000, scoped, tag = 'internal scratch']
  %s0 = inlined_call_operand.vmem [shape: f32[8,16], index: 0, kind: input, shape index: {}]
  %s1 = inlined_call_operand.vmem [shape: f32[8,2], index: 1, kind: input, shape index: {}]
  %s2 = inlined_call_operand.hbm [shape: f32[1,8,128], index: 2, kind: output, shape index: {}]
  %s3 = sld [smem:[#allocation0]]
  $region18: #{tpu_custom_call.1} parent=0
    _
  %s5 = ssub.s32 1, %s3
  %s6 = scalar_select 0, %s5, %s3
  $region1: #{tpu_custom_call.1} parent=0
    #allocation2 [shape = 'u8[4096]{0}', space=vmem, size = 0x1000, scoped, tag = 'output window, operand 0, single buffered']
    #allocation3 [shape = 's32[1]{0}', space=sflag, size = 0x4, scoped, tag = 'scoped memory for tpu_custom_call.1']
    %7 = vsyncpa [#allocation3], 0
    // Predicated region
    $region2: #{tpu_custom_call.1} parent=1 // pred_check
      _
    $region3: #{tpu_custom_call.1} parent=1 // pred_check_branch
      %9 = sbr.rel (0) target = $region5
    $region4: #{tpu_custom_call.1} parent=1 // pred_region
      _
    $region5: #{tpu_custom_call.1} parent=1 // pred_fallthru
      _
    // Predicated region
    $region6: #{tpu_custom_call.1} parent=1 // pred_check
      _
    $region7: #{tpu_custom_call.1} parent=1 // pred_check_branch
      %11 = sbr.rel (0) target = $region9
    $region8: #{tpu_custom_call.1} parent=1 // pred_region
      _
    $region9: #{tpu_custom_call.1} parent=1 // pred_fallthru
      _
    %v12 = vld [vmem:[%s0] sm:$0xff]
    %v13 = vld [vmem:[%s1] sm:$0xff]
    %v14 = vcvt.f32.s32.to.zero.pseudo %v13
    %vm15 = vcmask 130048
    %v16 = vsel %vm15, %v12, -inf
    %17 = vmax.xlane.f32.xlu0 %v16
    %v18 = vpop.xlane.xlu0 %17
    %v19 = vsub.f32 %v12, %v18
    %v20 = vmul.f32 %v19, 1.442695
    %v21 = vpow.pop %v20
    %v22 = vsel %vm15, %v21, 0.0
    %23 = vadd.xlane.f32.xlu0 %v22
    %v24 = vpop.xlane.xlu0 %23
    %v25 = vlog2.pop %v24
    %v26 = vmul.f32 %v25, 0.6931472
    %v27 = vlaneseq
    %v28 = vand.u32 %v27, 127
    %29 = vset.pattern.permute.xlu0 0
    %30 = vperm.xlu0 %29, %v14
    %v31 = vpop.permute.xlu0 %30
    %vm32 = vcmp.eq.s32.totalorder %v28, %v31
    %v33 = vsel %vm32, %v12, 0.0
    %v34 = vsel %vm15, %v33, 0.0
    %35 = vadd.xlane.f32.xlu0 %v34
    %v36 = vpop.xlane.xlu0 %35
    %v37 = vsub.f32 %v36, %v18
    %v38 = vsub.f32 %v37, %v26
    %v39 = vsel %vm15, %v12, 0.0
    %40 = vadd.xlane.f32.xlu0 %v39
    %v41 = vpop.xlane.xlu0 %40
    %v42 = vadd.f32 %v18, %v26
    %v43 = vmul.f32 %v42, 16.0
    %v44 = vsub.f32 %v41, %v43
    %v45 = vmul.f32 %v38, 0.9
    %v46 = vmul.f32 %v44, 0.00625
    %v47 = vadd.f32 %v45, %v46
    %v48 = vsub.f32 0.0, %v47
    %v49 = vlaneseq
    %v50 = vshrl.u32 %v49, 7
    %s51 = smul.u32 0, 8
    %v52 = vstv %s51
    %v53 = vadd.s32 %v50, %v52
    %vm54 = vcmp.lt.s32.totalorder %v53, 8
    %v55 = vmul.f32 %v48, %v13
    %v56 = vsel %vm54, %v55, 0.0
    %58 = vrot.lane.b32.xlu0 %v56, 127
    %v59 = vpop.permute.xlu0 %58
    %vm61 = vcmask 7168
    %v62 = vsel %vm61, %v59, 0.0
    %63 = vadd.xlane.f32.xlu0 %v62
    %v64 = vpop.xlane.xlu0 %63
    %v65 = vrot.slane %v64, 4
    %v66 = vadd.f32 %v64, %v65
    %v67 = vrot.slane %v66, 2
    %v68 = vadd.f32 %v66, %v67
    %v69 = vrot.slane %v68, 1
    %v70 = vadd.f32 %v68, %v69
    %s71 = vtos %v70
    %v72 = vstv %s71
    %73 = vst [vmem:[#allocation2] sm:$0xff] %v72
    // Predicated region
    $region10: #{tpu_custom_call.1} parent=1 // pred_check
      _
    $region11: #{tpu_custom_call.1} parent=1 // pred_check_branch
      %75 = sbr.rel (0) target = $region13
    $region12: #{tpu_custom_call.1} parent=1 // pred_region
      %s77 = ssub.s32 128, 128
      %78 = vsyncadd [#allocation3], %s77
      %s80 = sshll.u32 [#allocation2], 4
      %s81 = int_to_ptr.vmem [resolvable:$true] %s80
      %83 = dma.vmem_to_hbm [thread:$0]  %s81, 128, %s2, [#allocation3]
    $region13: #{tpu_custom_call.1} parent=1 // pred_fallthru
      _
    // Predicated region
    $region14: #{tpu_custom_call.1} parent=1 // pred_check
      _
    $region15: #{tpu_custom_call.1} parent=1 // pred_check_branch
      %85 = sbr.rel (0) target = $region17
    $region16: #{tpu_custom_call.1} parent=1 // pred_region
      %86 = dma.done [#allocation3], 128
    $region17: #{tpu_custom_call.1} parent=1 // pred_fallthru
      _
    %87 = vsyncpa [#allocation3], 1

</llo_original>
